<compile_context>
chip_gen: v7x
topology: tpu7x:2x2x1
jax: 0.10.0
libtpu: 0.0.40
codegen_flags: <defaults>
</compile_context>

<pallas_src>
import jax
import jax.numpy as jnp
from jax.experimental import pallas as pl
from jax.experimental.pallas import tpu as pltpu


def _round_up(x, m):
    return ((x + m - 1) // m) * m


def _make_mlp_kernel(num_layers):
    """Kernel for a num_layers-deep MLP: (Linear, ReLU)*(L-1), Linear, sigmoid."""

    def kernel(*refs):
        x_ref = refs[0]
        o_ref = refs[-1]
        wb = refs[1:-1]  # (w1, b1, ..., wL, bL); W_i is (in_i, out_i)
        h = x_ref[...]
        for li in range(num_layers):  # static unroll at trace time
            w = wb[2 * li][...]
            b = wb[2 * li + 1][...]
            h = jnp.dot(h, w, preferred_element_type=jnp.float32) + b
            if li < num_layers - 1:
                h = jnp.maximum(h, 0.0)  # ReLU on hidden layers
        # Numerically-stable sigmoid on the EUP: sigmoid(z) = 0.5*tanh(z/2)+0.5.
        # No exp overflow for very negative z, no divide on the VALU.
        o_ref[...] = (0.5 * jnp.tanh(0.5 * h) + 0.5).astype(o_ref.dtype)

    return kernel


def mlp_forward(x, params, *, block_b_cap=1024):
    """Run the MLP forward pass.

    x: (B, input_size) float32.
    params: flat tuple (w1, b1, ..., wL, bL); W_i is (in_i, out_i), b_i is (1, out_i).
    block_b_cap: max batch-tile size (sweep 512/1024/2048; 1024 is the default
      knee — past that the (block_b, 64) f32 intermediates spill vregs hard).
      On v5e (single vector-store slot) prefer the smaller end if spills show up.
    Returns sigmoid(model(x)) with the size-1 output-feature dim squeezed.
    """
    assert len(params) >= 2 and len(params) % 2 == 0
    num_layers = len(params) // 2
    B, in_size = x.shape
    out_size = params[-2].shape[1]

    # --- batch tiling: pick num_tiles first, then the smallest aligned tile ---
    #  * >= 2 tiles once B >= 16 so "parallel" shards across v7x's 2 TCs.
    #  * block_b is a multiple of 8 (f32 sublane rule); padding is <= 7 rows/tile.
    min_tiles = 2 if B >= 16 else 1
    num_tiles = max(pl.cdiv(B, block_b_cap), min_tiles)
    block_b = _round_up(pl.cdiv(B, num_tiles), 8)
    B_pad = block_b * num_tiles
    if B_pad != B:  # pad only when needed; no extra HBM copy of x otherwise
        x = jnp.zeros((B_pad, in_size), x.dtype).at[:B, :].set(x)

    # Weights/biases: full tensor, grid-invariant index_map -> VMEM resident
    # across all grid steps (all 2-D: (in, out) weights, (1, out) biases).
    full_spec = lambda arr: pl.BlockSpec(arr.shape, lambda i: (0, 0))

    out = pl.pallas_call(
        _make_mlp_kernel(num_layers),
        out_shape=jax.ShapeDtypeStruct((B_pad, out_size), jnp.float32),
        grid_spec=pltpu.PrefetchScalarGridSpec(
            num_scalar_prefetch=0,
            grid=(num_tiles,),
            in_specs=[pl.BlockSpec((block_b, in_size), lambda i: (i, 0))]
                     + [full_spec(t) for t in params],
            # Last dim of the output block equals the full array dim (always
            # legal), so for out_size=1 we store only the true column via a
            # handful of masked vst instead of a 128-lane padded slab.
            out_specs=pl.BlockSpec((block_b, out_size), lambda i: (i, 0)),
        ),
        compiler_params=pltpu.CompilerParams(
            dimension_semantics=("parallel",)),  # batch tiles shard across TCs
    )(x, *params)

    if B_pad != B:
        out = out[:B]
    # torch's `.squeeze()` drops every size-1 dim (including a size-1 batch);
    # we only drop the size-1 output-feature dim so the batch rank stays stable.
    if out_size == 1:
        out = jnp.squeeze(out, axis=-1)
    return out


def init_params(key, input_size, hidden_sizes, output_size):
    """PyTorch-style Linear init: U(-1/sqrt(fan_in), 1/sqrt(fan_in)).

    Weights are stored as (in, out) so the kernel computes x @ W + b.
    NOTE: at widths 16/32/64/1 the matmuls occupy a sliver of the MXU and the
    kernel is overhead/HBM-bound; the only lever is batch tiling.  If hidden
    sizes ever grow, pad them to multiples of 256 (v6e/v7x MXU) / 128 (v5e).
    """
    sizes = [input_size] + list(hidden_sizes) + [output_size]
    params = []
    for fan_in, fan_out in zip(sizes[:-1], sizes[1:]):
        key, kw, kb = jax.random.split(key, 3)
        bound = 1.0 / jnp.sqrt(fan_in)
        w = jax.random.uniform(kw, (fan_in, fan_out), jnp.float32, -bound, bound)
        b = jax.random.uniform(kb, (1, fan_out), jnp.float32, -bound, bound)
        params += [w, b]
    return tuple(params)


if __name__ == "__main__":
    key = jax.random.PRNGKey(0)

    batch = 8
    input_size = 16
    hidden_sizes = [32, 64]
    output_size = 1

    key, kx = jax.random.split(key)
    x = jax.random.normal(kx, (batch, input_size), dtype=jnp.float32)
    params = init_params(key, input_size, hidden_sizes, output_size)

    # Pure-JAX reference.
    def ref_forward(xx, prm):
        h = xx
        n = len(prm) // 2
        for li in range(n):
            h = h @ prm[2 * li] + prm[2 * li + 1]
            if li < n - 1:
                h = jnp.maximum(h, 0.0)
        return jnp.squeeze(jax.nn.sigmoid(h), axis=-1)

    y = jax.block_until_ready(mlp_forward(x, params))
    ref = ref_forward(x, params)
    assert y.shape == (batch,), y.shape
    assert jnp.allclose(y, ref, atol=1e-5, rtol=1e-5)

    # Ragged batch (B=13): single tile, sublane pad to 16, slice back.
    key, kx2 = jax.random.split(key)
    x2 = jax.random.normal(kx2, (13, input_size), dtype=jnp.float32)
    y2 = jax.block_until_ready(mlp_forward(x2, params))
    assert y2.shape == (13,), y2.shape
    assert jnp.allclose(y2, ref_forward(x2, params), atol=1e-5, rtol=1e-5)

    # Multi-tile batch (B=40 -> 2 grid steps, block_b=24, 8 pad rows total):
    # exercises the >=2-tile (v7x megacore) path and minimal-padding tiling.
    key, kx3 = jax.random.split(key)
    x3 = jax.random.normal(kx3, (40, input_size), dtype=jnp.float32)
    y3 = jax.block_until_ready(mlp_forward(x3, params))
    assert y3.shape == (40,), y3.shape
    assert jnp.allclose(y3, ref_forward(x3, params), atol=1e-5, rtol=1e-5)

    print("KERNEL_OK")
</pallas_src>

<mosaic_0001>
module attributes {stable_mosaic.version = 11 : i64} {
  func.func @kernel(%arg0: i32, %arg1: memref<8x16xf32, #tpu.memory_space<vmem>>, %arg2: memref<16x32xf32, #tpu.memory_space<vmem>>, %arg3: memref<1x32xf32, #tpu.memory_space<vmem>>, %arg4: memref<32x64xf32, #tpu.memory_space<vmem>>, %arg5: memref<1x64xf32, #tpu.memory_space<vmem>>, %arg6: memref<64x1xf32, #tpu.memory_space<vmem>>, %arg7: memref<1x1xf32, #tpu.memory_space<vmem>>, %arg8: memref<8x1xf32, #tpu.memory_space<vmem>>) attributes {dimension_semantics = [#tpu.dimension_semantics<parallel>], iteration_bounds = array<i64: 1>, scalar_prefetch = 0 : i64, scratch_operands = 0 : i64, tpu.core_type = #tpu.core_type<tc>, window_params = [{transform_indices = @transform_0, window_bounds = array<i64: 8, 16>}, {pipeline_mode = #tpu.pipeline_mode<synchronous>, transform_indices = @transform_1, window_bounds = array<i64: 16, 32>}, {pipeline_mode = #tpu.pipeline_mode<synchronous>, transform_indices = @transform_2, window_bounds = array<i64: 1, 32>}, {pipeline_mode = #tpu.pipeline_mode<synchronous>, transform_indices = @transform_3, window_bounds = array<i64: 32, 64>}, {pipeline_mode = #tpu.pipeline_mode<synchronous>, transform_indices = @transform_4, window_bounds = array<i64: 1, 64>}, {pipeline_mode = #tpu.pipeline_mode<synchronous>, transform_indices = @transform_5, window_bounds = array<i64: 64, 1>}, {pipeline_mode = #tpu.pipeline_mode<synchronous>, transform_indices = @transform_6, window_bounds = array<i64: 1, 1>}, {transform_indices = @transform_7, window_bounds = array<i64: 8, 1>}]} {
    %c0 = arith.constant 0 : index
    %c0_0 = arith.constant 0 : index
    %0 = vector.load %arg1[%c0, %c0_0] : memref<8x16xf32, #tpu.memory_space<vmem>>, vector<8x16xf32>
    %c0_1 = arith.constant 0 : index
    %c0_2 = arith.constant 0 : index
    %1 = vector.load %arg2[%c0_1, %c0_2] : memref<16x32xf32, #tpu.memory_space<vmem>>, vector<16x32xf32>
    %c0_3 = arith.constant 0 : index
    %c0_4 = arith.constant 0 : index
    %2 = vector.load %arg3[%c0_3, %c0_4] : memref<1x32xf32, #tpu.memory_space<vmem>>, vector<1x32xf32>
    %cst = arith.constant dense<0.000000e+00> : vector<8x32xf32>
    %3 = tpu.matmul %0, %1, %cst {dimension_numbers = #tpu.dot_dimension_numbers<[1], [0], [0], [1], [0, 0, 1, 1], [], []>} : vector<8x16xf32>, vector<16x32xf32>, vector<8x32xf32> -> vector<8x32xf32>
    %4 = vector.broadcast %2 : vector<1x32xf32> to vector<8x32xf32>
    %5 = arith.addf %3, %4 : vector<8x32xf32>
    %cst_5 = arith.constant 0.000000e+00 : f32
    %6 = vector.broadcast %cst_5 : f32 to vector<8x32xf32>
    %7 = arith.maximumf %5, %6 : vector<8x32xf32>
    %c0_6 = arith.constant 0 : index
    %c0_7 = arith.constant 0 : index
    %8 = vector.load %arg4[%c0_6, %c0_7] : memref<32x64xf32, #tpu.memory_space<vmem>>, vector<32x64xf32>
    %c0_8 = arith.constant 0 : index
    %c0_9 = arith.constant 0 : index
    %9 = vector.load %arg5[%c0_8, %c0_9] : memref<1x64xf32, #tpu.memory_space<vmem>>, vector<1x64xf32>
    %cst_10 = arith.constant dense<0.000000e+00> : vector<8x64xf32>
    %10 = tpu.matmul %7, %8, %cst_10 {dimension_numbers = #tpu.dot_dimension_numbers<[1], [0], [0], [1], [0, 0, 1, 1], [], []>} : vector<8x32xf32>, vector<32x64xf32>, vector<8x64xf32> -> vector<8x64xf32>
    %11 = vector.broadcast %9 : vector<1x64xf32> to vector<8x64xf32>
    %12 = arith.addf %10, %11 : vector<8x64xf32>
    %cst_11 = arith.constant 0.000000e+00 : f32
    %13 = vector.broadcast %cst_11 : f32 to vector<8x64xf32>
    %14 = arith.maximumf %12, %13 : vector<8x64xf32>
    %c0_12 = arith.constant 0 : index
    %c0_13 = arith.constant 0 : index
    %15 = vector.load %arg6[%c0_12, %c0_13] : memref<64x1xf32, #tpu.memory_space<vmem>>, vector<64x1xf32>
    %c0_14 = arith.constant 0 : index
    %c0_15 = arith.constant 0 : index
    %16 = vector.load %arg7[%c0_14, %c0_15] : memref<1x1xf32, #tpu.memory_space<vmem>>, vector<1x1xf32>
    %cst_16 = arith.constant dense<0.000000e+00> : vector<8x1xf32>
    %17 = tpu.matmul %14, %15, %cst_16 {dimension_numbers = #tpu.dot_dimension_numbers<[1], [0], [0], [1], [0, 0, 1, 1], [], []>} : vector<8x64xf32>, vector<64x1xf32>, vector<8x1xf32> -> vector<8x1xf32>
    %18 = vector.broadcast %16 : vector<1x1xf32> to vector<8x1xf32>
    %19 = arith.addf %17, %18 : vector<8x1xf32>
    %cst_17 = arith.constant 5.000000e-01 : f32
    %20 = vector.broadcast %cst_17 : f32 to vector<8x1xf32>
    %21 = arith.mulf %20, %19 : vector<8x1xf32>
    %22 = math.tanh %21 : vector<8x1xf32>
    %cst_18 = arith.constant 5.000000e-01 : f32
    %23 = vector.broadcast %cst_18 : f32 to vector<8x1xf32>
    %24 = arith.mulf %23, %22 : vector<8x1xf32>
    %cst_19 = arith.constant 5.000000e-01 : f32
    %25 = vector.broadcast %cst_19 : f32 to vector<8x1xf32>
    %26 = arith.addf %24, %25 : vector<8x1xf32>
    %c0_20 = arith.constant 0 : index
    %c0_21 = arith.constant 0 : index
    %27 = vector.load %arg8[%c0_20, %c0_21] : memref<8x1xf32, #tpu.memory_space<vmem>>, vector<8x1xf32>
    tpu.vector_store %arg8[%c0_20, %c0_21], %26 {strides = array<i32>} : memref<8x1xf32, #tpu.memory_space<vmem>>, vector<8x1xf32>,
    return
  }
  func.func @transform_0(%arg0: i32) -> (i32, i32) {
    %c0_i32 = arith.constant 0 : i32
    %c0_i32_0 = arith.constant 0 : i32
    return %arg0, %c0_i32 : i32, i32
  }
  func.func @transform_1(%arg0: i32) -> (i32, i32) {
    %c0_i32 = arith.constant 0 : i32
    %c0_i32_0 = arith.constant 0 : i32
    %c0_i32_1 = arith.constant 0 : i32
    return %c0_i32, %c0_i32_0 : i32, i32
  }
  func.func @transform_2(%arg0: i32) -> (i32, i32) {
    %c0_i32 = arith.constant 0 : i32
    %c0_i32_0 = arith.constant 0 : i32
    %c0_i32_1 = arith.constant 0 : i32
    return %c0_i32, %c0_i32_0 : i32, i32
  }
  func.func @transform_3(%arg0: i32) -> (i32, i32) {
    %c0_i32 = arith.constant 0 : i32
    %c0_i32_0 = arith.constant 0 : i32
    %c0_i32_1 = arith.constant 0 : i32
    return %c0_i32, %c0_i32_0 : i32, i32
  }
  func.func @transform_4(%arg0: i32) -> (i32, i32) {
    %c0_i32 = arith.constant 0 : i32
    %c0_i32_0 = arith.constant 0 : i32
    %c0_i32_1 = arith.constant 0 : i32
    return %c0_i32, %c0_i32_0 : i32, i32
  }
  func.func @transform_5(%arg0: i32) -> (i32, i32) {
    %c0_i32 = arith.constant 0 : i32
    %c0_i32_0 = arith.constant 0 : i32
    %c0_i32_1 = arith.constant 0 : i32
    return %c0_i32, %c0_i32_0 : i32, i32
  }
  func.func @transform_6(%arg0: i32) -> (i32, i32) {
    %c0_i32 = arith.constant 0 : i32
    %c0_i32_0 = arith.constant 0 : i32
    %c0_i32_1 = arith.constant 0 : i32
    return %c0_i32, %c0_i32_0 : i32, i32
  }
  func.func @transform_7(%arg0: i32) -> (i32, i32) {
    %c0_i32 = arith.constant 0 : i32
    %c0_i32_0 = arith.constant 0 : i32
    return %arg0, %c0_i32 : i32, i32
  }
}

</mosaic_0001>

<llo_original>
// kernel: tpu_custom_call.1
$region0: #{tpu_custom_call.1}
  #allocation0 [shape = 'u32[]', space=smem, size = 0x4, offset = 0x4, fixed_abs, tag = 'smem constant byte address 0x4 - core index']
  #allocation1 [shape = 'u32[144,128]{1,0:T(1,128)}', space=vmem, size = 0x12000, scoped, tag = 'internal scratch']
  #allocation2 [shape = 'f32[1,1]{1,0:T(1,128)S(1)}', space=vmem, size = 0x200, scoped, tag = 'scoped memory for tpu_custom_call.1']
  %s0 = inlined_call_operand.vmem [shape: f32[8,16], index: 0, kind: input, shape index: {}]
  %s1 = inlined_call_operand.vmem [shape: f32[16,32], index: 1, kind: input, shape index: {}]
  %s2 = inlined_call_operand.vmem [shape: f32[1,32], index: 2, kind: input, shape index: {}]
  %s3 = inlined_call_operand.vmem [shape: f32[32,64], index: 3, kind: input, shape index: {}]
  %s4 = inlined_call_operand.vmem [shape: f32[1,64], index: 4, kind: input, shape index: {}]
  %s5 = inlined_call_operand.vmem [shape: f32[64,1], index: 5, kind: input, shape index: {}]
  %s6 = inlined_call_operand.<no memory space> [shape: f32[1,1], index: 6, kind: input, shape index: {}]
  %s7 = inlined_call_operand.vmem [shape: f32[8,1], index: 7, kind: output, shape index: {}]
  %s8 = sld [smem:[#allocation0]]
  $region38: #{tpu_custom_call.1} parent=0
    _
  %s10 = ssub.s32 1, %s8
  %s11 = scalar_select 0, %s10, %s8
  %v12 = vstv %s6
  %13 = vst [vmem:[#allocation2] sm:$0x1] %v12
  // Predicated region
  $region2: #{tpu_custom_call.1} parent=0 // pred_check
    _
  $region3: #{tpu_custom_call.1} parent=0 // pred_check_branch
    %15 = sbr.rel (0) target = $region5
  $region4: #{tpu_custom_call.1} parent=0 // pred_region
    _
  $region5: #{tpu_custom_call.1} parent=0 // pred_fallthru
    _
  // Predicated region
  $region6: #{tpu_custom_call.1} parent=0 // pred_check
    _
  $region7: #{tpu_custom_call.1} parent=0 // pred_check_branch
    %17 = sbr.rel (0) target = $region9
  $region8: #{tpu_custom_call.1} parent=0 // pred_region
    _
  $region9: #{tpu_custom_call.1} parent=0 // pred_fallthru
    _
  // Predicated region
  $region10: #{tpu_custom_call.1} parent=0 // pred_check
    _
  $region11: #{tpu_custom_call.1} parent=0 // pred_check_branch
    %19 = sbr.rel (0) target = $region13
  $region12: #{tpu_custom_call.1} parent=0 // pred_region
    _
  $region13: #{tpu_custom_call.1} parent=0 // pred_fallthru
    _
  // Predicated region
  $region14: #{tpu_custom_call.1} parent=0 // pred_check
    _
  $region15: #{tpu_custom_call.1} parent=0 // pred_check_branch
    %21 = sbr.rel (0) target = $region17
  $region16: #{tpu_custom_call.1} parent=0 // pred_region
    _
  $region17: #{tpu_custom_call.1} parent=0 // pred_fallthru
    _
  // Predicated region
  $region18: #{tpu_custom_call.1} parent=0 // pred_check
    _
  $region19: #{tpu_custom_call.1} parent=0 // pred_check_branch
    %23 = sbr.rel (0) target = $region21
  $region20: #{tpu_custom_call.1} parent=0 // pred_region
    _
  $region21: #{tpu_custom_call.1} parent=0 // pred_fallthru
    _
  // Predicated region
  $region22: #{tpu_custom_call.1} parent=0 // pred_check
    _
  $region23: #{tpu_custom_call.1} parent=0 // pred_check_branch
    %25 = sbr.rel (0) target = $region25
  $region24: #{tpu_custom_call.1} parent=0 // pred_region
    _
  $region25: #{tpu_custom_call.1} parent=0 // pred_fallthru
    _
  // Predicated region
  $region26: #{tpu_custom_call.1} parent=0 // pred_check
    _
  $region27: #{tpu_custom_call.1} parent=0 // pred_check_branch
    %27 = sbr.rel (0) target = $region29
  $region28: #{tpu_custom_call.1} parent=0 // pred_region
    _
  $region29: #{tpu_custom_call.1} parent=0 // pred_fallthru
    _
  %v28 = vld [vmem:[%s0] sm:$0xff]
  %v29 = vld [vmem:[%s1] sm:$0xff]
  %v30 = vld [vmem:[%s1 + $0x8] sm:$0xff]
  %v31 = vld [vmem:[%s2] sm:$0x1]
  %v33 = vlaneseq
  %v34 = vshrl.u32 %v33, 7
  %v35 = vsub.s32 0, %v34
  %v36 = vrot.slane %v31, %v35
  %vm38 = vcmask 130048
  %v40 = vsel %vm38, %v28, 0
  %42 = vmatprep.subr.mxu0 0.0
  %43 = vmatpush1.msra.mxu0 %v29
  %44 = vmatprep.subr.mxu0 0.0
  %45 = vmatpush1.msra.mxu0 %v30
  %46 = vmatprep.subr.mxu0 0.0
  %47 = vmatpush1.msra.mxu0 0.0
  %48 = vmatprep.subr.mxu0 0.0
  %49 = vmatpush1.msra.mxu0 0.0
  %50 = vmatprep.subr.mxu0 0.0
  %51 = vmatpush1.msra.mxu0 0.0
  %52 = vmatprep.subr.mxu0 0.0
  %53 = vmatpush1.msra.mxu0 0.0
  %54 = vmatprep.subr.mxu0 0.0
  %55 = vmatpush1.msra.mxu0 0.0
  %56 = vmatprep.subr.mxu0 0.0
  %57 = vmatpush1.msra.mxu0 0.0
  %58 = vmatprep.subr.mxu0 0.0
  %59 = vmatpush1.msra.mxu0 0.0
  %60 = vmatprep.subr.mxu0 0.0
  %61 = vmatpush1.msra.mxu0 0.0
  %62 = vmatprep.subr.mxu0 0.0
  %63 = vmatpush1.msra.mxu0 0.0
  %64 = vmatprep.subr.mxu0 0.0
  %65 = vmatpush1.msra.mxu0 0.0
  %66 = vmatprep.subr.mxu0 0.0
  %67 = vmatpush1.msra.mxu0 0.0
  %68 = vmatprep.subr.mxu0 0.0
  %69 = vmatpush1.msra.mxu0 0.0
  %70 = vmatprep.subr.mxu0 0.0
  %71 = vmatpush1.msra.mxu0 0.0
  %72 = vmatprep.subr.mxu0 0.0
  %73 = vmatpush1.msra.mxu0 0.0
  %74 = vmatprep.subr.mxu0 0.0
  %75 = vmatpush1.msra.mxu0 0.0
  %76 = vmatprep.subr.mxu0 0.0
  %77 = vmatpush1.msra.mxu0 0.0
  %78 = vmatprep.subr.mxu0 0.0
  %79 = vmatpush1.msra.mxu0 0.0
  %80 = vmatprep.subr.mxu0 0.0
  %81 = vmatpush1.msra.mxu0 0.0
  %82 = vmatprep.subr.mxu0 0.0
  %83 = vmatpush1.msra.mxu0 0.0
  %84 = vmatprep.subr.mxu0 0.0
  %85 = vmatpush1.msra.mxu0 0.0
  %86 = vmatprep.subr.mxu0 0.0
  %87 = vmatpush1.msra.mxu0 0.0
  %88 = vmatprep.subr.mxu0 0.0
  %89 = vmatpush1.msra.mxu0 0.0
  %90 = vmatprep.subr.mxu0 0.0
  %91 = vmatpush1.msra.mxu0 0.0
  %92 = vmatprep.subr.mxu0 0.0
  %93 = vmatpush1.msra.mxu0 0.0
  %94 = vmatprep.subr.mxu0 0.0
  %95 = vmatpush1.msra.mxu0 0.0
  %96 = vmatprep.subr.mxu0 0.0
  %97 = vmatpush1.msra.mxu0 0.0
  %98 = vmatprep.subr.mxu0 0.0
  %99 = vmatpush1.msra.mxu0 0.0
  %100 = vmatprep.subr.mxu0 0.0
  %101 = vmatpush1.msra.mxu0 0.0
  %102 = vmatprep.subr.mxu0 0.0
  %103 = vmatpush1.msra.mxu0 0.0
  %104 = vmatprep.subr.mxu0 0.0
  %105 = vmatpush1.msra.mxu0 0.0
  %106 = vmatprep.mubr.f32.mxu0 0.0
  %107 = vmatmul.mubr.f32.gmra.mrb[0].mxu0 %v40
  %v108 = vpop.f32.mrb[0].mxu0
  %v109 = vadd.f32 %v36, %v108
  %v110 = vpop.f32.mrb[0].mxu0
  %111 = vdwg.mxu0
  %v112 = vmax.f32 %v109, 0.0
  %v113 = vld [vmem:[%s3] sm:$0xff]
  %v114 = vld [vmem:[%s3 + $0x8] sm:$0xff]
  %v115 = vld [vmem:[%s3 + $0x10] sm:$0xff]
  %v116 = vld [vmem:[%s3 + $0x18] sm:$0xff]
  %v117 = vld [vmem:[%s4] sm:$0x1]
  %v119 = vlaneseq
  %v120 = vshrl.u32 %v119, 7
  %v121 = vsub.s32 0, %v120
  %v122 = vrot.slane %v117, %v121
  %vm124 = vcmask 261120
  %v126 = vsel %vm124, %v112, 0
  %128 = vmatprep.subr.mxu0 0.0
  %129 = vmatpush1.msra.mxu0 %v113
  %130 = vmatprep.subr.mxu0 0.0
  %131 = vmatpush1.msra.mxu0 %v114
  %132 = vmatprep.subr.mxu0 0.0
  %133 = vmatpush1.msra.mxu0 %v115
  %134 = vmatprep.subr.mxu0 0.0
  %135 = vmatpush1.msra.mxu0 %v116
  %136 = vmatprep.subr.mxu0 0.0
  %137 = vmatpush1.msra.mxu0 0.0
  %138 = vmatprep.subr.mxu0 0.0
  %139 = vmatpush1.msra.mxu0 0.0
  %140 = vmatprep.subr.mxu0 0.0
  %141 = vmatpush1.msra.mxu0 0.0
  %142 = vmatprep.subr.mxu0 0.0
  %143 = vmatpush1.msra.mxu0 0.0
  %144 = vmatprep.subr.mxu0 0.0
  %145 = vmatpush1.msra.mxu0 0.0
  %146 = vmatprep.subr.mxu0 0.0
  %147 = vmatpush1.msra.mxu0 0.0
  %148 = vmatprep.subr.mxu0 0.0
  %149 = vmatpush1.msra.mxu0 0.0
  %150 = vmatprep.subr.mxu0 0.0
  %151 = vmatpush1.msra.mxu0 0.0
  %152 = vmatprep.subr.mxu0 0.0
  %153 = vmatpush1.msra.mxu0 0.0
  %154 = vmatprep.subr.mxu0 0.0
  %155 = vmatpush1.msra.mxu0 0.0
  %156 = vmatprep.subr.mxu0 0.0
  %157 = vmatpush1.msra.mxu0 0.0
  %158 = vmatprep.subr.mxu0 0.0
  %159 = vmatpush1.msra.mxu0 0.0
  %160 = vmatprep.subr.mxu0 0.0
  %161 = vmatpush1.msra.mxu0 0.0
  %162 = vmatprep.subr.mxu0 0.0
  %163 = vmatpush1.msra.mxu0 0.0
  %164 = vmatprep.subr.mxu0 0.0
  %165 = vmatpush1.msra.mxu0 0.0
  %166 = vmatprep.subr.mxu0 0.0
  %167 = vmatpush1.msra.mxu0 0.0
  %168 = vmatprep.subr.mxu0 0.0
  %169 = vmatpush1.msra.mxu0 0.0
  %170 = vmatprep.subr.mxu0 0.0
  %171 = vmatpush1.msra.mxu0 0.0
  %172 = vmatprep.subr.mxu0 0.0
  %173 = vmatpush1.msra.mxu0 0.0
  %174 = vmatprep.subr.mxu0 0.0
  %175 = vmatpush1.msra.mxu0 0.0
  %176 = vmatprep.subr.mxu0 0.0
  %177 = vmatpush1.msra.mxu0 0.0
  %178 = vmatprep.subr.mxu0 0.0
  %179 = vmatpush1.msra.mxu0 0.0
  %180 = vmatprep.subr.mxu0 0.0
  %181 = vmatpush1.msra.mxu0 0.0
  %182 = vmatprep.subr.mxu0 0.0
  %183 = vmatpush1.msra.mxu0 0.0
  %184 = vmatprep.subr.mxu0 0.0
  %185 = vmatpush1.msra.mxu0 0.0
  %186 = vmatprep.subr.mxu0 0.0
  %187 = vmatpush1.msra.mxu0 0.0
  %188 = vmatprep.subr.mxu0 0.0
  %189 = vmatpush1.msra.mxu0 0.0
  %190 = vmatprep.subr.mxu0 0.0
  %191 = vmatpush1.msra.mxu0 0.0
  %192 = vmatprep.mubr.f32.mxu0 0.0
  %193 = vmatmul.mubr.f32.gmra.mrb[0].mxu0 %v126
  %v194 = vpop.f32.mrb[0].mxu0
  %v195 = vadd.f32 %v122, %v194
  %v196 = vpop.f32.mrb[0].mxu0
  %197 = vdwg.mxu0
  %v198 = vmax.f32 %v195, 0.0
  %v199 = vld [vmem:[%s5] sm:$0xff]
  %v200 = vld [vmem:[%s5 + $0x8] sm:$0xff]
  %v201 = vld [vmem:[%s5 + $0x10] sm:$0xff]
  %v202 = vld [vmem:[%s5 + $0x18] sm:$0xff]
  %v203 = vld [vmem:[%s5 + $0x20] sm:$0xff]
  %v204 = vld [vmem:[%s5 + $0x28] sm:$0xff]
  %v205 = vld [vmem:[%s5 + $0x30] sm:$0xff]
  %v206 = vld [vmem:[%s5 + $0x38] sm:$0xff]
  %v207 = vld [vmem:[#allocation2] sm:$0x1]
  %v209 = vlaneseq
  %v210 = vshrl.u32 %v209, 7
  %v211 = vsub.s32 0, %v210
  %v212 = vrot.slane %v207, %v211
  %vm214 = vcmask 523264
  %v216 = vsel %vm214, %v198, 0
  %218 = vmatprep.subr.mxu0 0.0
  %219 = vmatpush1.msra.mxu0 %v199
  %220 = vmatprep.subr.mxu0 0.0
  %221 = vmatpush1.msra.mxu0 %v200
  %222 = vmatprep.subr.mxu0 0.0
  %223 = vmatpush1.msra.mxu0 %v201
  %224 = vmatprep.subr.mxu0 0.0
  %225 = vmatpush1.msra.mxu0 %v202
  %226 = vmatprep.subr.mxu0 0.0
  %227 = vmatpush1.msra.mxu0 %v203
  %228 = vmatprep.subr.mxu0 0.0
  %229 = vmatpush1.msra.mxu0 %v204
  %230 = vmatprep.subr.mxu0 0.0
  %231 = vmatpush1.msra.mxu0 %v205
  %232 = vmatprep.subr.mxu0 0.0
  %233 = vmatpush1.msra.mxu0 %v206
  %234 = vmatprep.subr.mxu0 0.0
  %235 = vmatpush1.msra.mxu0 0.0
  %236 = vmatprep.subr.mxu0 0.0
  %237 = vmatpush1.msra.mxu0 0.0
  %238 = vmatprep.subr.mxu0 0.0
  %239 = vmatpush1.msra.mxu0 0.0
  %240 = vmatprep.subr.mxu0 0.0
  %241 = vmatpush1.msra.mxu0 0.0
  %242 = vmatprep.subr.mxu0 0.0
  %243 = vmatpush1.msra.mxu0 0.0
  %244 = vmatprep.subr.mxu0 0.0
  %245 = vmatpush1.msra.mxu0 0.0
  %246 = vmatprep.subr.mxu0 0.0
  %247 = vmatpush1.msra.mxu0 0.0
  %248 = vmatprep.subr.mxu0 0.0
  %249 = vmatpush1.msra.mxu0 0.0
  %250 = vmatprep.subr.mxu0 0.0
  %251 = vmatpush1.msra.mxu0 0.0
  %252 = vmatprep.subr.mxu0 0.0
  %253 = vmatpush1.msra.mxu0 0.0
  %254 = vmatprep.subr.mxu0 0.0
  %255 = vmatpush1.msra.mxu0 0.0
  %256 = vmatprep.subr.mxu0 0.0
  %257 = vmatpush1.msra.mxu0 0.0
  %258 = vmatprep.subr.mxu0 0.0
  %259 = vmatpush1.msra.mxu0 0.0
  %260 = vmatprep.subr.mxu0 0.0
  %261 = vmatpush1.msra.mxu0 0.0
  %262 = vmatprep.subr.mxu0 0.0
  %263 = vmatpush1.msra.mxu0 0.0
  %264 = vmatprep.subr.mxu0 0.0
  %265 = vmatpush1.msra.mxu0 0.0
  %266 = vmatprep.subr.mxu0 0.0
  %267 = vmatpush1.msra.mxu0 0.0
  %268 = vmatprep.subr.mxu0 0.0
  %269 = vmatpush1.msra.mxu0 0.0
  %270 = vmatprep.subr.mxu0 0.0
  %271 = vmatpush1.msra.mxu0 0.0
  %272 = vmatprep.subr.mxu0 0.0
  %273 = vmatpush1.msra.mxu0 0.0
  %274 = vmatprep.subr.mxu0 0.0
  %275 = vmatpush1.msra.mxu0 0.0
  %276 = vmatprep.subr.mxu0 0.0
  %277 = vmatpush1.msra.mxu0 0.0
  %278 = vmatprep.subr.mxu0 0.0
  %279 = vmatpush1.msra.mxu0 0.0
  %280 = vmatprep.subr.mxu0 0.0
  %281 = vmatpush1.msra.mxu0 0.0
  %282 = vmatprep.mubr.f32.mxu0 0.0
  %283 = vmatmul.mubr.f32.gmra.mrb[0].mxu0 %v216
  %v284 = vpop.f32.mrb[0].mxu0
  %v285 = vadd.f32 %v212, %v284
  %v286 = vpop.f32.mrb[0].mxu0
  %287 = vdwg.mxu0
  %v288 = vmul.f32 %v285, 0.5
  %v289 = vtanh.pop %v288
  %v290 = vmul.f32 %v289, 0.5
  %v291 = vadd.f32 %v290, 0.5
  %vm292 = vcmask 7168
  %293 = vst.msk [vmem:[%s7] sm:$0xff] %vm292, %v291
  // Predicated region
  $region30: #{tpu_custom_call.1} parent=0 // pred_check
    _
  $region31: #{tpu_custom_call.1} parent=0 // pred_check_branch
    %295 = sbr.rel (0) target = $region33
  $region32: #{tpu_custom_call.1} parent=0 // pred_region
    _
  $region33: #{tpu_custom_call.1} parent=0 // pred_fallthru
    _
  // Predicated region
  $region34: #{tpu_custom_call.1} parent=0 // pred_check
    _
  $region35: #{tpu_custom_call.1} parent=0 // pred_check_branch
    %297 = sbr.rel (0) target = $region37
  $region36: #{tpu_custom_call.1} parent=0 // pred_region
    _
  $region37: #{tpu_custom_call.1} parent=0 // pred_fallthru
    _

</llo_original>
